<compile_context>
chip_gen: v7x
topology: tpu7x:2x2x1
jax: 0.10.0
libtpu: 0.0.40
codegen_flags: <defaults>
</compile_context>

<pallas_src>
import jax
import jax.numpy as jnp
from jax.experimental import pallas as pl
from jax.experimental.pallas import tpu as pltpu

LANE = 128


def _round_up(a, m):
    return ((a + m - 1) // m) * m


def _sublane(dtype):
    # sublane packing: 8 rows for 4-byte, 16 for 2-byte, 32 for 1-byte dtypes
    return {4: 8, 2: 16, 1: 32}.get(jnp.dtype(dtype).itemsize, 8)


def _make_mlp_kernel(n_layers, split_first, out_widths):
    """Kernel over refs: (x, [cond,] W0[, W0c], W1..W_{L-1}, biases, out).

    out_widths[i] is the lane-padded output width of layer i (multiple of 128).
    """

    def kernel(*refs):
        out_ref = refs[-1]
        b_ref = refs[-2]
        if split_first:
            x_ref, c_ref = refs[0], refs[1]
            w_refs = refs[2:-2]            # W0x, W0c, W1, ..., W_{L-1}
            w0x_ref, w0c_ref = w_refs[0], w_refs[1]
            rest_w = w_refs[2:]
            # Fused torch.cat((x, condition), 1) @ W0 == x @ W0[:in] + cond @ W0[in:]
            h = jnp.dot(x_ref[...].astype(w0x_ref.dtype), w0x_ref[...],
                        preferred_element_type=jnp.float32)
            h = h + jnp.dot(c_ref[...].astype(w0c_ref.dtype), w0c_ref[...],
                            preferred_element_type=jnp.float32)
        else:
            x_ref = refs[0]
            w_refs = refs[1:-2]            # W0, W1, ..., W_{L-1}
            w0_ref = w_refs[0]
            rest_w = w_refs[1:]
            h = jnp.dot(x_ref[...].astype(w0_ref.dtype), w0_ref[...],
                        preferred_element_type=jnp.float32)

        biases = b_ref[...].astype(jnp.float32)        # (n_layers, max_width), tiny
        h = h + biases[0:1, :out_widths[0]]
        if n_layers > 1:
            h = jnp.maximum(h, 0.0)                    # nn.ReLU after each hidden Linear

        for layer in range(1, n_layers):
            w_ref = rest_w[layer - 1]
            h = jnp.dot(h.astype(w_ref.dtype), w_ref[...],
                        preferred_element_type=jnp.float32)
            h = h + biases[layer:layer + 1, :out_widths[layer]]
            if layer < n_layers - 1:
                h = jnp.maximum(h, 0.0)

        out_ref[...] = h.astype(out_ref.dtype)

    return kernel


def mlp_forward(x, condition, params, *, block_batch=1024):
    """params: list of (W [in, out], b [1, out]) per linear layer (W pre-transposed)."""
    has_condition = condition is not None
    n_layers = len(params)
    batch, in_dim = x.shape
    cond_dim = int(condition.shape[1]) if has_condition else 0
    out_dim = int(params[-1][0].shape[1])
    act_dtype = x.dtype

    # ---- lane-pad every layer's output width to a multiple of 128 -------------
    out_widths = [_round_up(int(w.shape[1]), LANE) for (w, _) in params]
    max_w = max(out_widths)

    # ---- fuse torch.cat((x, condition), 1) -------------------------------------
    # Small feature widths: one XLA concat in the wrapper -> single streamed input.
    # Wide features: split W0 along its input axis -> two dots in-kernel.
    split_first = has_condition and (in_dim + cond_dim > LANE)
    if has_condition and not split_first:
        x = jnp.concatenate((x, condition), axis=1)
        condition = None
    x_width = int(x.shape[1])

    # ---- zero-padded weights (padded rows/cols contribute exact zeros) ---------
    w_arrays = []
    for layer, (w, _) in enumerate(params):
        rows_in, cols_in = int(w.shape[0]), int(w.shape[1])
        rows_pad = rows_in if layer == 0 else out_widths[layer - 1]
        w_p = jnp.pad(w, ((0, rows_pad - rows_in), (0, out_widths[layer] - cols_in)))
        if layer == 0 and split_first:
            w_arrays += [w_p[:in_dim, :], w_p[in_dim:in_dim + cond_dim, :]]
        else:
            w_arrays.append(w_p)

    # ---- all biases packed into a single f32 [n_layers, max_w] array -----------
    biases = jnp.zeros((n_layers, max_w), jnp.float32)
    for layer, (_, b) in enumerate(params):
        b_flat = jnp.reshape(b, (-1,)).astype(jnp.float32)
        biases = biases.at[layer, : b_flat.shape[0]].set(b_flat)

    # ---- batch tile: dtype-aware sublanes, big tiles, >=2 grid steps if possible
    sub = _sublane(act_dtype)
    padded0 = _round_up(batch, sub)
    TB = max(sub, min(_round_up(block_batch, sub), padded0))
    if padded0 >= 2 * sub and padded0 // TB < 2:
        # split into (at least) two tiles so v7x's 2 TensorCores both get work
        TB = _round_up((padded0 + 1) // 2, sub)

    # ---- generation-aware VMEM budget ------------------------------------------
    def _tile_bytes(r, c, dt):
        s = _sublane(dt)
        return (_round_up(max(int(r), 1), s) * _round_up(max(int(c), 1), LANE)
                * jnp.dtype(dt).itemsize)

    try:
        vmem_cap = int(pltpu.get_tpu_info().vmem_capacity_bytes)   # 64 MiB v7x, 128 MiB v5e/v6e
    except Exception:
        vmem_cap = 64 * 2**20                                      # conservative fallback
    ceiling = (vmem_cap * 7) // 8                                  # headroom for Mosaic internals

    param_vmem = sum(_tile_bytes(a.shape[0], a.shape[1], a.dtype) for a in w_arrays)
    param_vmem += _tile_bytes(n_layers, max_w, jnp.float32)

    def _budget(tb):
        io = 2 * (_tile_bytes(tb, x_width, act_dtype)
                  + (_tile_bytes(tb, cond_dim, act_dtype) if split_first else 0)
                  + _tile_bytes(tb, out_widths[-1], act_dtype))     # double-buffered I/O tiles
        act = 4 * _tile_bytes(tb, max(max_w, x_width), jnp.float32)  # live f32 intermediates
        return param_vmem + io + act + (4 << 20)

    while _budget(TB) > ceiling and TB > sub:
        TB = max(sub, _round_up(TB // 2, sub))

    padded = _round_up(batch, TB)
    grid = (padded // TB,)
    vmem_limit = int(min(ceiling, max(32 << 20, _budget(TB))))

    # ---- pad ragged batch -------------------------------------------------------
    pad = padded - batch
    if pad:
        x = jnp.pad(x, ((0, pad), (0, 0)))
        if split_first:
            condition = jnp.pad(condition, ((0, pad), (0, 0)))

    # ---- inputs & BlockSpecs ----------------------------------------------------
    streamed_inputs = [x]
    streamed_specs = [pl.BlockSpec((TB, x_width), lambda i: (i, 0))]
    if split_first:
        streamed_inputs.append(condition)
        streamed_specs.append(pl.BlockSpec((TB, cond_dim), lambda i: (i, 0)))

    resident = list(w_arrays) + [biases]

    def _resident_specs(single_buffer):
        specs = []
        for a in resident:
            if single_buffer:
                # constant index_map -> fetched once; no need for a second buffer
                specs.append(pl.BlockSpec(a.shape, lambda i: (0, 0),
                                          pipeline_mode=pl.Buffered(1)))
            else:
                specs.append(pl.BlockSpec(a.shape, lambda i: (0, 0)))
        return specs

    out_spec = pl.BlockSpec((TB, out_widths[-1]), lambda i: (i, 0))

    # ---- cost estimate ----------------------------------------------------------
    itemsize = jnp.dtype(act_dtype).itemsize
    flops = 2 * padded * sum(int(a.shape[0]) * int(a.shape[1]) for a in w_arrays)
    bytes_acc = (padded * (x_width + (cond_dim if split_first else 0)) * itemsize
                 + padded * out_widths[-1] * itemsize
                 + sum(int(a.size) * jnp.dtype(a.dtype).itemsize for a in resident))
    cost = pl.CostEstimate(flops=int(flops), transcendentals=0,
                           bytes_accessed=int(bytes_acc))

    kernel = _make_mlp_kernel(n_layers, split_first, out_widths)

    def _run(single_buffer):
        return pl.pallas_call(
            kernel,
            out_shape=jax.ShapeDtypeStruct((padded, out_widths[-1]), act_dtype),
            grid=grid,
            in_specs=streamed_specs + _resident_specs(single_buffer),
            out_specs=out_spec,
            compiler_params=pltpu.CompilerParams(
                dimension_semantics=("parallel",),   # batch tiles shard across v7x's 2 TCs
                vmem_limit_bytes=vmem_limit),
            cost_estimate=cost,
        )(*(streamed_inputs + resident))

    try:
        out = _run(single_buffer=hasattr(pl, "Buffered"))
    except Exception:
        # fall back to default (double-buffered) resident specs if Buffered(1) rejects
        out = _run(single_buffer=False)

    return out[:batch, :out_dim]


def init_mlp_params(key, in_dim, out_dim, condition_dim, n_hidden, n_layers,
                    init_zeros=True, dtype=jnp.float32):
    """Deterministic parameter init matching the PyTorch module's layer shapes."""
    eff_in = in_dim + (condition_dim if condition_dim is not None else 0)
    if isinstance(n_hidden, int):
        n_hidden = [n_hidden for _ in range(n_layers - 1)]

    dims = [eff_in] + list(n_hidden) + [out_dim]
    params = []
    for i in range(n_layers):
        fan_in, fan_out = dims[i], dims[i + 1]
        key, kw, kb = jax.random.split(key, 3)
        if init_zeros and i == n_layers - 1:
            w = jnp.zeros((fan_in, fan_out), dtype)
            b = jnp.zeros((1, fan_out), dtype)
        else:
            bound = 1.0 / (fan_in ** 0.5)   # nn.Linear default uniform init bound
            w = jax.random.uniform(kw, (fan_in, fan_out), dtype, -bound, bound)
            b = jax.random.uniform(kb, (1, fan_out), dtype, -bound, bound)
        params.append((w, b))
    return params


def mlp_reference(x, condition, params):
    """Pure-JAX reference for correctness check."""
    h = jnp.concatenate((x, condition), axis=1) if condition is not None else x
    for i, (w, b) in enumerate(params):
        h = h @ w.astype(jnp.float32) + b.astype(jnp.float32)
        if i < len(params) - 1:
            h = jnp.maximum(h, 0.0)
    return h


if __name__ == "__main__":
    key = jax.random.PRNGKey(0)

    # Case 1: small conditioned MLP (wrapper-concat first layer, lane-padded output).
    batch, in_dim, cond_dim, out_dim, n_hidden, n_layers = 8, 4, 4, 4, 32, 3
    kx, kc, kp, key = jax.random.split(key, 4)
    x = jax.random.normal(kx, (batch, in_dim), jnp.float32)
    cond = jax.random.normal(kc, (batch, cond_dim), jnp.float32)
    # init_zeros=False so all layers are exercised non-trivially
    params = init_mlp_params(kp, in_dim, out_dim, cond_dim, n_hidden, n_layers,
                             init_zeros=False)
    out = jax.block_until_ready(mlp_forward(x, cond, params))
    ref = mlp_reference(x, cond, params)
    assert out.shape == (batch, out_dim)
    assert jnp.allclose(out, ref, atol=1e-5, rtol=1e-5)

    # Case 2: ragged batch -> padding path + >=2 grid steps.
    kx2, kc2, key = jax.random.split(key, 3)
    xb = jax.random.normal(kx2, (13, in_dim), jnp.float32)
    cb = jax.random.normal(kc2, (13, cond_dim), jnp.float32)
    out2 = jax.block_until_ready(mlp_forward(xb, cb, params))
    ref2 = mlp_reference(xb, cb, params)
    assert out2.shape == (13, out_dim)
    assert jnp.allclose(out2, ref2, atol=1e-5, rtol=1e-5)

    # Case 3: wide conditioned input -> split-W0 (in-kernel fused concat) path.
    kx3, kc3, kp3, key = jax.random.split(key, 4)
    b3, i3, c3, o3, h3, l3 = 20, 96, 80, 4, 128, 2
    x3 = jax.random.normal(kx3, (b3, i3), jnp.float32)
    cd3 = jax.random.normal(kc3, (b3, c3), jnp.float32)
    p3 = init_mlp_params(kp3, i3, o3, c3, h3, l3, init_zeros=False)
    out3 = jax.block_until_ready(mlp_forward(x3, cd3, p3))
    ref3 = mlp_reference(x3, cd3, p3)
    assert out3.shape == (b3, o3)
    assert jnp.allclose(out3, ref3, atol=1e-4, rtol=1e-4)

    # Case 4: bf16 weights (halved residency / full-rate MXU); f32 accumulation.
    params_bf16 = [(w.astype(jnp.bfloat16), b) for (w, b) in params]
    out4 = jax.block_until_ready(mlp_forward(x, cond, params_bf16))
    assert out4.shape == (batch, out_dim)
    assert jnp.allclose(out4, ref, atol=5e-2, rtol=5e-2)

    # Case 5: module default init_zeros=True -> final layer zeroed -> all-zero output.
    params_z = init_mlp_params(kp, in_dim, out_dim, cond_dim, n_hidden, n_layers,
                               init_zeros=True)
    out5 = jax.block_until_ready(mlp_forward(x, cond, params_z))
    assert jnp.allclose(out5, jnp.zeros_like(out5))

    print("KERNEL_OK")
</pallas_src>

<mosaic_0001>
module attributes {stable_mosaic.version = 11 : i64} {
  func.func @kernel(%arg0: i32, %arg1: memref<8x8xf32, #tpu.memory_space<vmem>>, %arg2: memref<8x128xf32, #tpu.memory_space<vmem>>, %arg3: memref<128x128xf32, #tpu.memory_space<vmem>>, %arg4: memref<128x128xf32, #tpu.memory_space<vmem>>, %arg5: memref<3x128xf32, #tpu.memory_space<vmem>>, %arg6: memref<8x128xf32, #tpu.memory_space<vmem>>) attributes {dimension_semantics = [#tpu.dimension_semantics<parallel>], iteration_bounds = array<i64: 1>, scalar_prefetch = 0 : i64, scratch_operands = 0 : i64, tpu.core_type = #tpu.core_type<tc>, window_params = [{transform_indices = @transform_0, window_bounds = array<i64: 8, 8>}, {pipeline_mode = #tpu.pipeline_mode<synchronous>, transform_indices = @transform_1, window_bounds = array<i64: 8, 128>}, {pipeline_mode = #tpu.pipeline_mode<synchronous>, transform_indices = @transform_2, window_bounds = array<i64: 128, 128>}, {pipeline_mode = #tpu.pipeline_mode<synchronous>, transform_indices = @transform_3, window_bounds = array<i64: 128, 128>}, {pipeline_mode = #tpu.pipeline_mode<synchronous>, transform_indices = @transform_4, window_bounds = array<i64: 3, 128>}, {transform_indices = @transform_5, window_bounds = array<i64: 8, 128>}]} {
    %c0 = arith.constant 0 : index
    %c0_0 = arith.constant 0 : index
    %0 = vector.load %arg1[%c0, %c0_0] : memref<8x8xf32, #tpu.memory_space<vmem>>, vector<8x8xf32>
    %c0_1 = arith.constant 0 : index
    %c0_2 = arith.constant 0 : index
    %1 = vector.load %arg2[%c0_1, %c0_2] : memref<8x128xf32, #tpu.memory_space<vmem>>, vector<8x128xf32>
    %cst = arith.constant dense<0.000000e+00> : vector<8x128xf32>
    %2 = tpu.matmul %0, %1, %cst {dimension_numbers = #tpu.dot_dimension_numbers<[1], [0], [0], [1], [0, 0, 1, 1], [], []>} : vector<8x8xf32>, vector<8x128xf32>, vector<8x128xf32> -> vector<8x128xf32>
    %c0_3 = arith.constant 0 : index
    %c0_4 = arith.constant 0 : index
    %3 = vector.load %arg5[%c0_3, %c0_4] : memref<3x128xf32, #tpu.memory_space<vmem>>, vector<3x128xf32>
    %4 = vector.extract_strided_slice %3 {offsets = [0, 0], sizes = [1, 128], strides = [1, 1]} : vector<3x128xf32> to vector<1x128xf32>
    %5 = vector.broadcast %4 : vector<1x128xf32> to vector<8x128xf32>
    %6 = arith.addf %2, %5 : vector<8x128xf32>
    %cst_5 = arith.constant 0.000000e+00 : f32
    %7 = vector.broadcast %cst_5 : f32 to vector<8x128xf32>
    %8 = arith.maximumf %6, %7 : vector<8x128xf32>
    %c0_6 = arith.constant 0 : index
    %c0_7 = arith.constant 0 : index
    %9 = vector.load %arg3[%c0_6, %c0_7] : memref<128x128xf32, #tpu.memory_space<vmem>>, vector<128x128xf32>
    %cst_8 = arith.constant dense<0.000000e+00> : vector<8x128xf32>
    %10 = tpu.matmul %8, %9, %cst_8 {dimension_numbers = #tpu.dot_dimension_numbers<[1], [0], [0], [1], [0, 0, 1, 1], [], []>} : vector<8x128xf32>, vector<128x128xf32>, vector<8x128xf32> -> vector<8x128xf32>
    %11 = vector.extract_strided_slice %3 {offsets = [1, 0], sizes = [1, 128], strides = [1, 1]} : vector<3x128xf32> to vector<1x128xf32>
    %12 = vector.broadcast %11 : vector<1x128xf32> to vector<8x128xf32>
    %13 = arith.addf %10, %12 : vector<8x128xf32>
    %cst_9 = arith.constant 0.000000e+00 : f32
    %14 = vector.broadcast %cst_9 : f32 to vector<8x128xf32>
    %15 = arith.maximumf %13, %14 : vector<8x128xf32>
    %c0_10 = arith.constant 0 : index
    %c0_11 = arith.constant 0 : index
    %16 = vector.load %arg4[%c0_10, %c0_11] : memref<128x128xf32, #tpu.memory_space<vmem>>, vector<128x128xf32>
    %cst_12 = arith.constant dense<0.000000e+00> : vector<8x128xf32>
    %17 = tpu.matmul %15, %16, %cst_12 {dimension_numbers = #tpu.dot_dimension_numbers<[1], [0], [0], [1], [0, 0, 1, 1], [], []>} : vector<8x128xf32>, vector<128x128xf32>, vector<8x128xf32> -> vector<8x128xf32>
    %18 = vector.extract_strided_slice %3 {offsets = [2, 0], sizes = [1, 128], strides = [1, 1]} : vector<3x128xf32> to vector<1x128xf32>
    %19 = vector.broadcast %18 : vector<1x128xf32> to vector<8x128xf32>
    %20 = arith.addf %17, %19 : vector<8x128xf32>
    %c0_13 = arith.constant 0 : index
    %c0_14 = arith.constant 0 : index
    %21 = vector.load %arg6[%c0_13, %c0_14] : memref<8x128xf32, #tpu.memory_space<vmem>>, vector<8x128xf32>
    tpu.vector_store %arg6[%c0_13, %c0_14], %20 {strides = array<i32>} : memref<8x128xf32, #tpu.memory_space<vmem>>, vector<8x128xf32>,
    return
  }
  func.func @transform_0(%arg0: i32) -> (i32, i32) {
    %c0_i32 = arith.constant 0 : i32
    %c0_i32_0 = arith.constant 0 : i32
    return %arg0, %c0_i32 : i32, i32
  }
  func.func @transform_1(%arg0: i32) -> (i32, i32) {
    %c0_i32 = arith.constant 0 : i32
    %c0_i32_0 = arith.constant 0 : i32
    %c0_i32_1 = arith.constant 0 : i32
    return %c0_i32, %c0_i32_0 : i32, i32
  }
  func.func @transform_2(%arg0: i32) -> (i32, i32) {
    %c0_i32 = arith.constant 0 : i32
    %c0_i32_0 = arith.constant 0 : i32
    %c0_i32_1 = arith.constant 0 : i32
    return %c0_i32, %c0_i32_0 : i32, i32
  }
  func.func @transform_3(%arg0: i32) -> (i32, i32) {
    %c0_i32 = arith.constant 0 : i32
    %c0_i32_0 = arith.constant 0 : i32
    %c0_i32_1 = arith.constant 0 : i32
    return %c0_i32, %c0_i32_0 : i32, i32
  }
  func.func @transform_4(%arg0: i32) -> (i32, i32) {
    %c0_i32 = arith.constant 0 : i32
    %c0_i32_0 = arith.constant 0 : i32
    %c0_i32_1 = arith.constant 0 : i32
    return %c0_i32, %c0_i32_0 : i32, i32
  }
  func.func @transform_5(%arg0: i32) -> (i32, i32) {
    %c0_i32 = arith.constant 0 : i32
    %c0_i32_0 = arith.constant 0 : i32
    return %arg0, %c0_i32 : i32, i32
  }
}

module attributes {stable_mosaic.version = 11 : i64} {
  func.func @kernel(%arg0: i32, %arg1: memref<8x8xf32, #tpu.memory_space<vmem>>, %arg2: memref<8x128xf32, #tpu.memory_space<vmem>>, %arg3: memref<128x128xf32, #tpu.memory_space<vmem>>, %arg4: memref<128x128xf32, #tpu.memory_space<vmem>>, %arg5: memref<3x128xf32, #tpu.memory_space<vmem>>, %arg6: memref<8x128xf32, #tpu.memory_space<vmem>>) attributes {dimension_semantics = [#tpu.dimension_semantics<parallel>], iteration_bounds = array<i64: 1>, scalar_prefetch = 0 : i64, scratch_operands = 0 : i64, tpu.core_type = #tpu.core_type<tc>, window_params = [{transform_indices = @transform_0, window_bounds = array<i64: 8, 8>}, {pipeline_mode = #tpu.pipeline_mode<synchronous>, transform_indices = @transform_1, window_bounds = array<i64: 8, 128>}, {pipeline_mode = #tpu.pipeline_mode<synchronous>, transform_indices = @transform_2, window_bounds = array<i64: 128, 128>}, {pipeline_mode = #tpu.pipeline_mode<synchronous>, transform_indices = @transform_3, window_bounds = array<i64: 128, 128>}, {pipeline_mode = #tpu.pipeline_mode<synchronous>, transform_indices = @transform_4, window_bounds = array<i64: 3, 128>}, {transform_indices = @transform_5, window_bounds = array<i64: 8, 128>}]} {
    %c0 = arith.constant 0 : index
    %c0_0 = arith.constant 0 : index
    %0 = vector.load %arg1[%c0, %c0_0] : memref<8x8xf32, #tpu.memory_space<vmem>>, vector<8x8xf32>
    %c0_1 = arith.constant 0 : index
    %c0_2 = arith.constant 0 : index
    %1 = vector.load %arg2[%c0_1, %c0_2] : memref<8x128xf32, #tpu.memory_space<vmem>>, vector<8x128xf32>
    %cst = arith.constant dense<0.000000e+00> : vector<8x128xf32>
    %2 = tpu.matmul %0, %1, %cst {dimension_numbers = #tpu.dot_dimension_numbers<[1], [0], [0], [1], [0, 0, 1, 1], [], []>} : vector<8x8xf32>, vector<8x128xf32>, vector<8x128xf32> -> vector<8x128xf32>
    %c0_3 = arith.constant 0 : index
    %c0_4 = arith.constant 0 : index
    %3 = vector.load %arg5[%c0_3, %c0_4] : memref<3x128xf32, #tpu.memory_space<vmem>>, vector<3x128xf32>
    %4 = vector.extract_strided_slice %3 {offsets = [0, 0], sizes = [1, 128], strides = [1, 1]} : vector<3x128xf32> to vector<1x128xf32>
    %5 = vector.broadcast %4 : vector<1x128xf32> to vector<8x128xf32>
    %6 = arith.addf %2, %5 : vector<8x128xf32>
    %cst_5 = arith.constant 0.000000e+00 : f32
    %7 = vector.broadcast %cst_5 : f32 to vector<8x128xf32>
    %8 = arith.maximumf %6, %7 : vector<8x128xf32>
    %c0_6 = arith.constant 0 : index
    %c0_7 = arith.constant 0 : index
    %9 = vector.load %arg3[%c0_6, %c0_7] : memref<128x128xf32, #tpu.memory_space<vmem>>, vector<128x128xf32>
    %cst_8 = arith.constant dense<0.000000e+00> : vector<8x128xf32>
    %10 = tpu.matmul %8, %9, %cst_8 {dimension_numbers = #tpu.dot_dimension_numbers<[1], [0], [0], [1], [0, 0, 1, 1], [], []>} : vector<8x128xf32>, vector<128x128xf32>, vector<8x128xf32> -> vector<8x128xf32>
    %11 = vector.extract_strided_slice %3 {offsets = [1, 0], sizes = [1, 128], strides = [1, 1]} : vector<3x128xf32> to vector<1x128xf32>
    %12 = vector.broadcast %11 : vector<1x128xf32> to vector<8x128xf32>
    %13 = arith.addf %10, %12 : vector<8x128xf32>
    %cst_9 = arith.constant 0.000000e+00 : f32
    %14 = vector.broadcast %cst_9 : f32 to vector<8x128xf32>
    %15 = arith.maximumf %13, %14 : vector<8x128xf32>
    %c0_10 = arith.constant 0 : index
    %c0_11 = arith.constant 0 : index
    %16 = vector.load %arg4[%c0_10, %c0_11] : memref<128x128xf32, #tpu.memory_space<vmem>>, vector<128x128xf32>
    %cst_12 = arith.constant dense<0.000000e+00> : vector<8x128xf32>
    %17 = tpu.matmul %15, %16, %cst_12 {dimension_numbers = #tpu.dot_dimension_numbers<[1], [0], [0], [1], [0, 0, 1, 1], [], []>} : vector<8x128xf32>, vector<128x128xf32>, vector<8x128xf32> -> vector<8x128xf32>
    %18 = vector.extract_strided_slice %3 {offsets = [2, 0], sizes = [1, 128], strides = [1, 1]} : vector<3x128xf32> to vector<1x128xf32>
    %19 = vector.broadcast %18 : vector<1x128xf32> to vector<8x128xf32>
    %20 = arith.addf %17, %19 : vector<8x128xf32>
    %c0_13 = arith.constant 0 : index
    %c0_14 = arith.constant 0 : index
    %21 = vector.load %arg6[%c0_13, %c0_14] : memref<8x128xf32, #tpu.memory_space<vmem>>, vector<8x128xf32>
    tpu.vector_store %arg6[%c0_13, %c0_14], %20 {strides = array<i32>} : memref<8x128xf32, #tpu.memory_space<vmem>>, vector<8x128xf32>,
    return
  }
  func.func @transform_0(%arg0: i32) -> (i32, i32) {
    %c0_i32 = arith.constant 0 : i32
    %c0_i32_0 = arith.constant 0 : i32
    return %arg0, %c0_i32 : i32, i32
  }
  func.func @transform_1(%arg0: i32) -> (i32, i32) {
    %c0_i32 = arith.constant 0 : i32
    %c0_i32_0 = arith.constant 0 : i32
    %c0_i32_1 = arith.constant 0 : i32
    return %c0_i32, %c0_i32_0 : i32, i32
  }
  func.func @transform_2(%arg0: i32) -> (i32, i32) {
    %c0_i32 = arith.constant 0 : i32
    %c0_i32_0 = arith.constant 0 : i32
    %c0_i32_1 = arith.constant 0 : i32
    return %c0_i32, %c0_i32_0 : i32, i32
  }
  func.func @transform_3(%arg0: i32) -> (i32, i32) {
    %c0_i32 = arith.constant 0 : i32
    %c0_i32_0 = arith.constant 0 : i32
    %c0_i32_1 = arith.constant 0 : i32
    return %c0_i32, %c0_i32_0 : i32, i32
  }
  func.func @transform_4(%arg0: i32) -> (i32, i32) {
    %c0_i32 = arith.constant 0 : i32
    %c0_i32_0 = arith.constant 0 : i32
    %c0_i32_1 = arith.constant 0 : i32
    return %c0_i32, %c0_i32_0 : i32, i32
  }
  func.func @transform_5(%arg0: i32) -> (i32, i32) {
    %c0_i32 = arith.constant 0 : i32
    %c0_i32_0 = arith.constant 0 : i32
    return %arg0, %c0_i32 : i32, i32
  }
}

</mosaic_0001>

<llo_original>
// kernel: tpu_custom_call.1
$region0: #{tpu_custom_call.1}
  #allocation0 [shape = 'u32[]', space=smem, size = 0x4, offset = 0x4, fixed_abs, tag = 'smem constant byte address 0x4 - core index']
  #allocation1 [shape = 'u32[144,128]{1,0:T(1,128)}', space=vmem, size = 0x12000, scoped, tag = 'internal scratch']
  %s0 = inlined_call_operand.hbm [shape: f32[8,8], index: 0, kind: input, shape index: {}]
  %s1 = inlined_call_operand.hbm [shape: f32[8,128], index: 1, kind: input, shape index: {}]
  %s2 = inlined_call_operand.hbm [shape: f32[128,128], index: 2, kind: input, shape index: {}]
  %s3 = inlined_call_operand.hbm [shape: f32[128,128], index: 3, kind: input, shape index: {}]
  %s4 = inlined_call_operand.vmem [shape: f32[3,128], index: 4, kind: input, shape index: {}]
  %s5 = inlined_call_operand.hbm [shape: f32[8,128], index: 5, kind: output, shape index: {}]
  %s6 = sld [smem:[#allocation0]]
  $region46: #{tpu_custom_call.1} parent=0
    _
  %s8 = ssub.s32 1, %s6
  %s9 = scalar_select 0, %s8, %s6
  $region1: #{tpu_custom_call.1} parent=0
    #allocation2 [shape = 'u8[4096]{0}', space=vmem, size = 0x1000, scoped, tag = 'input window, operand 0, single buffered']
    #allocation3 [shape = 's32[1]{0}', space=sflag, size = 0x4, scoped, tag = 'scoped memory for tpu_custom_call.1']
    #allocation4 [shape = 's32[1]{0}', space=sflag, size = 0x4, scoped, tag = 'scoped memory for tpu_custom_call.1']
    #allocation5 [shape = 'u8[4096]{0}', space=vmem, size = 0x1000, scoped, tag = 'input window, operand 1, single buffered']
    #allocation6 [shape = 's32[1]{0}', space=sflag, size = 0x4, scoped, tag = 'scoped memory for tpu_custom_call.1']
    #allocation7 [shape = 'u8[65536]{0}', space=vmem, size = 0x10000, scoped, tag = 'input window, operand 2, single buffered']
    #allocation8 [shape = 'u8[65536]{0}', space=vmem, size = 0x10000, scoped, tag = 'input window, operand 3, single buffered']
    #allocation9 [shape = 's32[1]{0}', space=sflag, size = 0x4, scoped, tag = 'scoped memory for tpu_custom_call.1']
    #allocation10 [shape = 'u8[4096]{0}', space=vmem, size = 0x1000, scoped, tag = 'output window, operand 0, single buffered']
    %10 = vsyncpa [#allocation3], 0
    %11 = vsyncpa [#allocation6], 0
    %12 = vsyncpa [#allocation9], 0
    %13 = vsyncpa [#allocation4], 0
    // Predicated region
    $region2: #{tpu_custom_call.1} parent=1 // pred_check
      _
    $region3: #{tpu_custom_call.1} parent=1 // pred_check_branch
      %15 = sbr.rel (0) target = $region5
    $region4: #{tpu_custom_call.1} parent=1 // pred_region
      %s17 = ssub.s32 128, 128
      %18 = vsyncadd [#allocation3], %s17
      %s20 = sshll.u32 [#allocation2], 4
      %s21 = int_to_ptr.vmem [resolvable:$true] %s20
      %23 = dma.hbm_to_vmem [thread:$0]  %s0, 128, %s21, [#allocation3]
    $region5: #{tpu_custom_call.1} parent=1 // pred_fallthru
      _
    // Predicated region
    $region6: #{tpu_custom_call.1} parent=1 // pred_check
      _
    $region7: #{tpu_custom_call.1} parent=1 // pred_check_branch
      %25 = sbr.rel (0) target = $region9
    $region8: #{tpu_custom_call.1} parent=1 // pred_region
      %s27 = ssub.s32 128, 128
      %28 = vsyncadd [#allocation6], %s27
      %s30 = sshll.u32 [#allocation5], 4
      %s31 = int_to_ptr.vmem [resolvable:$true] %s30
      %33 = dma.hbm_to_vmem [thread:$0]  %s1, 128, %s31, [#allocation6]
    $region9: #{tpu_custom_call.1} parent=1 // pred_fallthru
      _
    // Predicated region
    $region10: #{tpu_custom_call.1} parent=1 // pred_check
      _
    $region11: #{tpu_custom_call.1} parent=1 // pred_check_branch
      %35 = sbr.rel (0) target = $region13
    $region12: #{tpu_custom_call.1} parent=1 // pred_region
      %s37 = ssub.s32 2048, 2048
      %38 = vsyncadd [#allocation6], %s37
      %s39 = sshll.u32 [#allocation7], 4
      %s40 = int_to_ptr.vmem [resolvable:$true] %s39
      %45 = dma.hbm_to_vmem [thread:$0]  %s2, 2048, %s40, [#allocation6], 128, 128, 8
    $region13: #{tpu_custom_call.1} parent=1 // pred_fallthru
      _
    // Predicated region
    $region14: #{tpu_custom_call.1} parent=1 // pred_check
      _
    $region15: #{tpu_custom_call.1} parent=1 // pred_check_branch
      %47 = sbr.rel (0) target = $region17
    $region16: #{tpu_custom_call.1} parent=1 // pred_region
      %s49 = ssub.s32 2048, 2048
      %50 = vsyncadd [#allocation9], %s49
      %s51 = sshll.u32 [#allocation8], 4
      %s52 = int_to_ptr.vmem [resolvable:$true] %s51
      %57 = dma.hbm_to_vmem [thread:$0]  %s3, 2048, %s52, [#allocation9], 128, 128, 8
    $region17: #{tpu_custom_call.1} parent=1 // pred_fallthru
      _
    // Predicated region
    $region18: #{tpu_custom_call.1} parent=1 // pred_check
      _
    $region19: #{tpu_custom_call.1} parent=1 // pred_check_branch
      %59 = sbr.rel (0) target = $region21
    $region20: #{tpu_custom_call.1} parent=1 // pred_region
      _
    $region21: #{tpu_custom_call.1} parent=1 // pred_fallthru
      _
    // Predicated region
    $region22: #{tpu_custom_call.1} parent=1 // pred_check
      _
    $region23: #{tpu_custom_call.1} parent=1 // pred_check_branch
      %61 = sbr.rel (0) target = $region25
    $region24: #{tpu_custom_call.1} parent=1 // pred_region
      %62 = dma.done [#allocation3], 128
    $region25: #{tpu_custom_call.1} parent=1 // pred_fallthru
      _
    // Predicated region
    $region26: #{tpu_custom_call.1} parent=1 // pred_check
      _
    $region27: #{tpu_custom_call.1} parent=1 // pred_check_branch
      %64 = sbr.rel (0) target = $region29
    $region28: #{tpu_custom_call.1} parent=1 // pred_region
      %65 = dma.done [#allocation6], 128
    $region29: #{tpu_custom_call.1} parent=1 // pred_fallthru
      _
    // Predicated region
    $region30: #{tpu_custom_call.1} parent=1 // pred_check
      _
    $region31: #{tpu_custom_call.1} parent=1 // pred_check_branch
      %67 = sbr.rel (0) target = $region33
    $region32: #{tpu_custom_call.1} parent=1 // pred_region
      %68 = dma.done [#allocation6], 2048
    $region33: #{tpu_custom_call.1} parent=1 // pred_fallthru
      _
    // Predicated region
    $region34: #{tpu_custom_call.1} parent=1 // pred_check
      _
    $region35: #{tpu_custom_call.1} parent=1 // pred_check_branch
      %70 = sbr.rel (0) target = $region37
    $region36: #{tpu_custom_call.1} parent=1 // pred_region
      %71 = dma.done [#allocation9], 2048
    $region37: #{tpu_custom_call.1} parent=1 // pred_fallthru
      _
    %v72 = vld [vmem:[#allocation2] sm:$0xff]
    %v73 = vld [vmem:[#allocation5] sm:$0xff]
    %v74 = vld [vmem:[%s4] sm:$0x7]
    %v75 = vlaneseq
    %v76 = vshrl.u32 %v75, 7
    %v77 = vsub.s32 0, %v76
    %v78 = vrot.slane %v74, %v77
    %vm79 = vcmask 64512
    %v81 = vsel %vm79, %v72, 0
    %83 = vmatprep.subr.mxu0 0.0
    %84 = vmatpush1.msra.mxu0 %v73
    %85 = vmatprep.subr.mxu0 0.0
    %86 = vmatpush1.msra.mxu0 0.0
    %87 = vmatprep.subr.mxu0 0.0
    %88 = vmatpush1.msra.mxu0 0.0
    %89 = vmatprep.subr.mxu0 0.0
    %90 = vmatpush1.msra.mxu0 0.0
    %91 = vmatprep.subr.mxu0 0.0
    %92 = vmatpush1.msra.mxu0 0.0
    %93 = vmatprep.subr.mxu0 0.0
    %94 = vmatpush1.msra.mxu0 0.0
    %95 = vmatprep.subr.mxu0 0.0
    %96 = vmatpush1.msra.mxu0 0.0
    %97 = vmatprep.subr.mxu0 0.0
    %98 = vmatpush1.msra.mxu0 0.0
    %99 = vmatprep.subr.mxu0 0.0
    %100 = vmatpush1.msra.mxu0 0.0
    %101 = vmatprep.subr.mxu0 0.0
    %102 = vmatpush1.msra.mxu0 0.0
    %103 = vmatprep.subr.mxu0 0.0
    %104 = vmatpush1.msra.mxu0 0.0
    %105 = vmatprep.subr.mxu0 0.0
    %106 = vmatpush1.msra.mxu0 0.0
    %107 = vmatprep.subr.mxu0 0.0
    %108 = vmatpush1.msra.mxu0 0.0
    %109 = vmatprep.subr.mxu0 0.0
    %110 = vmatpush1.msra.mxu0 0.0
    %111 = vmatprep.subr.mxu0 0.0
    %112 = vmatpush1.msra.mxu0 0.0
    %113 = vmatprep.subr.mxu0 0.0
    %114 = vmatpush1.msra.mxu0 0.0
    %115 = vmatprep.subr.mxu0 0.0
    %116 = vmatpush1.msra.mxu0 0.0
    %117 = vmatprep.subr.mxu0 0.0
    %118 = vmatpush1.msra.mxu0 0.0
    %119 = vmatprep.subr.mxu0 0.0
    %120 = vmatpush1.msra.mxu0 0.0
    %121 = vmatprep.subr.mxu0 0.0
    %122 = vmatpush1.msra.mxu0 0.0
    %123 = vmatprep.subr.mxu0 0.0
    %124 = vmatpush1.msra.mxu0 0.0
    %125 = vmatprep.subr.mxu0 0.0
    %126 = vmatpush1.msra.mxu0 0.0
    %127 = vmatprep.subr.mxu0 0.0
    %128 = vmatpush1.msra.mxu0 0.0
    %129 = vmatprep.subr.mxu0 0.0
    %130 = vmatpush1.msra.mxu0 0.0
    %131 = vmatprep.subr.mxu0 0.0
    %132 = vmatpush1.msra.mxu0 0.0
    %133 = vmatprep.subr.mxu0 0.0
    %134 = vmatpush1.msra.mxu0 0.0
    %135 = vmatprep.subr.mxu0 0.0
    %136 = vmatpush1.msra.mxu0 0.0
    %137 = vmatprep.subr.mxu0 0.0
    %138 = vmatpush1.msra.mxu0 0.0
    %139 = vmatprep.subr.mxu0 0.0
    %140 = vmatpush1.msra.mxu0 0.0
    %141 = vmatprep.subr.mxu0 0.0
    %142 = vmatpush1.msra.mxu0 0.0
    %143 = vmatprep.subr.mxu0 0.0
    %144 = vmatpush1.msra.mxu0 0.0
    %145 = vmatprep.subr.mxu0 0.0
    %146 = vmatpush1.msra.mxu0 0.0
    %147 = vmatprep.mubr.f32.mxu0 0.0
    %148 = vmatmul.mubr.f32.gmra.mrb[0].mxu0 %v81
    %v149 = vpop.f32.mrb[0].mxu0
    %v150 = vadd.f32 %v78, %v149
    %v151 = vpop.f32.mrb[0].mxu0
    %152 = vdwg.mxu0
    %v153 = vmax.f32 %v150, 0.0
    %v154 = vld [vmem:[#allocation7] sm:$0xff]
    %v155 = vld [vmem:[#allocation7 + $0x8] sm:$0xff]
    %v156 = vld [vmem:[#allocation7 + $0x10] sm:$0xff]
    %v157 = vld [vmem:[#allocation7 + $0x18] sm:$0xff]
    %v158 = vld [vmem:[#allocation7 + $0x20] sm:$0xff]
    %v159 = vld [vmem:[#allocation7 + $0x28] sm:$0xff]
    %v160 = vld [vmem:[#allocation7 + $0x30] sm:$0xff]
    %v161 = vld [vmem:[#allocation7 + $0x38] sm:$0xff]
    %v162 = vld [vmem:[#allocation7 + $0x40] sm:$0xff]
    %v163 = vld [vmem:[#allocation7 + $0x48] sm:$0xff]
    %v164 = vld [vmem:[#allocation7 + $0x50] sm:$0xff]
    %v165 = vld [vmem:[#allocation7 + $0x58] sm:$0xff]
    %v166 = vld [vmem:[#allocation7 + $0x60] sm:$0xff]
    %v167 = vld [vmem:[#allocation7 + $0x68] sm:$0xff]
    %v168 = vld [vmem:[#allocation7 + $0x70] sm:$0xff]
    %v169 = vld [vmem:[#allocation7 + $0x78] sm:$0xff]
    %v170 = vlaneseq
    %v171 = vshrl.u32 %v170, 7
    %v172 = vsub.s32 1, %v171
    %v173 = vrot.slane %v74, %v172
    %174 = vmatprep.subr.mxu0 0.0
    %175 = vmatpush1.msra.mxu0 %v154
    %176 = vmatprep.subr.mxu0 0.0
    %177 = vmatpush1.msra.mxu0 %v155
    %178 = vmatprep.subr.mxu0 0.0
    %179 = vmatpush1.msra.mxu0 %v156
    %180 = vmatprep.subr.mxu0 0.0
    %181 = vmatpush1.msra.mxu0 %v157
    %182 = vmatprep.subr.mxu0 0.0
    %183 = vmatpush1.msra.mxu0 %v158
    %184 = vmatprep.subr.mxu0 0.0
    %185 = vmatpush1.msra.mxu0 %v159
    %186 = vmatprep.subr.mxu0 0.0
    %187 = vmatpush1.msra.mxu0 %v160
    %188 = vmatprep.subr.mxu0 0.0
    %189 = vmatpush1.msra.mxu0 %v161
    %190 = vmatprep.subr.mxu0 0.0
    %191 = vmatpush1.msra.mxu0 %v162
    %192 = vmatprep.subr.mxu0 0.0
    %193 = vmatpush1.msra.mxu0 %v163
    %194 = vmatprep.subr.mxu0 0.0
    %195 = vmatpush1.msra.mxu0 %v164
    %196 = vmatprep.subr.mxu0 0.0
    %197 = vmatpush1.msra.mxu0 %v165
    %198 = vmatprep.subr.mxu0 0.0
    %199 = vmatpush1.msra.mxu0 %v166
    %200 = vmatprep.subr.mxu0 0.0
    %201 = vmatpush1.msra.mxu0 %v167
    %202 = vmatprep.subr.mxu0 0.0
    %203 = vmatpush1.msra.mxu0 %v168
    %204 = vmatprep.subr.mxu0 0.0
    %205 = vmatpush1.msra.mxu0 %v169
    %206 = vmatprep.subr.mxu0 0.0
    %207 = vmatpush1.msra.mxu0 0.0
    %208 = vmatprep.subr.mxu0 0.0
    %209 = vmatpush1.msra.mxu0 0.0
    %210 = vmatprep.subr.mxu0 0.0
    %211 = vmatpush1.msra.mxu0 0.0
    %212 = vmatprep.subr.mxu0 0.0
    %213 = vmatpush1.msra.mxu0 0.0
    %214 = vmatprep.subr.mxu0 0.0
    %215 = vmatpush1.msra.mxu0 0.0
    %216 = vmatprep.subr.mxu0 0.0
    %217 = vmatpush1.msra.mxu0 0.0
    %218 = vmatprep.subr.mxu0 0.0
    %219 = vmatpush1.msra.mxu0 0.0
    %220 = vmatprep.subr.mxu0 0.0
    %221 = vmatpush1.msra.mxu0 0.0
    %222 = vmatprep.subr.mxu0 0.0
    %223 = vmatpush1.msra.mxu0 0.0
    %224 = vmatprep.subr.mxu0 0.0
    %225 = vmatpush1.msra.mxu0 0.0
    %226 = vmatprep.subr.mxu0 0.0
    %227 = vmatpush1.msra.mxu0 0.0
    %228 = vmatprep.subr.mxu0 0.0
    %229 = vmatpush1.msra.mxu0 0.0
    %230 = vmatprep.subr.mxu0 0.0
    %231 = vmatpush1.msra.mxu0 0.0
    %232 = vmatprep.subr.mxu0 0.0
    %233 = vmatpush1.msra.mxu0 0.0
    %234 = vmatprep.subr.mxu0 0.0
    %235 = vmatpush1.msra.mxu0 0.0
    %236 = vmatprep.subr.mxu0 0.0
    %237 = vmatpush1.msra.mxu0 0.0
    %238 = vmatprep.mubr.f32.mxu0 0.0
    %239 = vmatmul.mubr.f32.gmra.mrb[0].mxu0 %v153
    %v240 = vpop.f32.mrb[0].mxu0
    %v241 = vadd.f32 %v173, %v240
    %v242 = vpop.f32.mrb[0].mxu0
    %243 = vdwg.mxu0
    %v244 = vmax.f32 %v241, 0.0
    %v245 = vld [vmem:[#allocation8] sm:$0xff]
    %v246 = vld [vmem:[#allocation8 + $0x8] sm:$0xff]
    %v247 = vld [vmem:[#allocation8 + $0x10] sm:$0xff]
    %v248 = vld [vmem:[#allocation8 + $0x18] sm:$0xff]
    %v249 = vld [vmem:[#allocation8 + $0x20] sm:$0xff]
    %v250 = vld [vmem:[#allocation8 + $0x28] sm:$0xff]
    %v251 = vld [vmem:[#allocation8 + $0x30] sm:$0xff]
    %v252 = vld [vmem:[#allocation8 + $0x38] sm:$0xff]
    %v253 = vld [vmem:[#allocation8 + $0x40] sm:$0xff]
    %v254 = vld [vmem:[#allocation8 + $0x48] sm:$0xff]
    %v255 = vld [vmem:[#allocation8 + $0x50] sm:$0xff]
    %v256 = vld [vmem:[#allocation8 + $0x58] sm:$0xff]
    %v257 = vld [vmem:[#allocation8 + $0x60] sm:$0xff]
    %v258 = vld [vmem:[#allocation8 + $0x68] sm:$0xff]
    %v259 = vld [vmem:[#allocation8 + $0x70] sm:$0xff]
    %v260 = vld [vmem:[#allocation8 + $0x78] sm:$0xff]
    %v261 = vlaneseq
    %v262 = vshrl.u32 %v261, 7
    %v263 = vsub.s32 2, %v262
    %v264 = vrot.slane %v74, %v263
    %265 = vmatprep.subr.mxu0 0.0
    %266 = vmatpush1.msra.mxu0 %v245
    %267 = vmatprep.subr.mxu0 0.0
    %268 = vmatpush1.msra.mxu0 %v246
    %269 = vmatprep.subr.mxu0 0.0
    %270 = vmatpush1.msra.mxu0 %v247
    %271 = vmatprep.subr.mxu0 0.0
    %272 = vmatpush1.msra.mxu0 %v248
    %273 = vmatprep.subr.mxu0 0.0
    %274 = vmatpush1.msra.mxu0 %v249
    %275 = vmatprep.subr.mxu0 0.0
    %276 = vmatpush1.msra.mxu0 %v250
    %277 = vmatprep.subr.mxu0 0.0
    %278 = vmatpush1.msra.mxu0 %v251
    %279 = vmatprep.subr.mxu0 0.0
    %280 = vmatpush1.msra.mxu0 %v252
    %281 = vmatprep.subr.mxu0 0.0
    %282 = vmatpush1.msra.mxu0 %v253
    %283 = vmatprep.subr.mxu0 0.0
    %284 = vmatpush1.msra.mxu0 %v254
    %285 = vmatprep.subr.mxu0 0.0
    %286 = vmatpush1.msra.mxu0 %v255
    %287 = vmatprep.subr.mxu0 0.0
    %288 = vmatpush1.msra.mxu0 %v256
    %289 = vmatprep.subr.mxu0 0.0
    %290 = vmatpush1.msra.mxu0 %v257
    %291 = vmatprep.subr.mxu0 0.0
    %292 = vmatpush1.msra.mxu0 %v258
    %293 = vmatprep.subr.mxu0 0.0
    %294 = vmatpush1.msra.mxu0 %v259
    %295 = vmatprep.subr.mxu0 0.0
    %296 = vmatpush1.msra.mxu0 %v260
    %297 = vmatprep.subr.mxu0 0.0
    %298 = vmatpush1.msra.mxu0 0.0
    %299 = vmatprep.subr.mxu0 0.0
    %300 = vmatpush1.msra.mxu0 0.0
    %301 = vmatprep.subr.mxu0 0.0
    %302 = vmatpush1.msra.mxu0 0.0
    %303 = vmatprep.subr.mxu0 0.0
    %304 = vmatpush1.msra.mxu0 0.0
    %305 = vmatprep.subr.mxu0 0.0
    %306 = vmatpush1.msra.mxu0 0.0
    %307 = vmatprep.subr.mxu0 0.0
    %308 = vmatpush1.msra.mxu0 0.0
    %309 = vmatprep.subr.mxu0 0.0
    %310 = vmatpush1.msra.mxu0 0.0
    %311 = vmatprep.subr.mxu0 0.0
    %312 = vmatpush1.msra.mxu0 0.0
    %313 = vmatprep.subr.mxu0 0.0
    %314 = vmatpush1.msra.mxu0 0.0
    %315 = vmatprep.subr.mxu0 0.0
    %316 = vmatpush1.msra.mxu0 0.0
    %317 = vmatprep.subr.mxu0 0.0
    %318 = vmatpush1.msra.mxu0 0.0
    %319 = vmatprep.subr.mxu0 0.0
    %320 = vmatpush1.msra.mxu0 0.0
    %321 = vmatprep.subr.mxu0 0.0
    %322 = vmatpush1.msra.mxu0 0.0
    %323 = vmatprep.subr.mxu0 0.0
    %324 = vmatpush1.msra.mxu0 0.0
    %325 = vmatprep.subr.mxu0 0.0
    %326 = vmatpush1.msra.mxu0 0.0
    %327 = vmatprep.subr.mxu0 0.0
    %328 = vmatpush1.msra.mxu0 0.0
    %329 = vmatprep.mubr.f32.mxu0 0.0
    %330 = vmatmul.mubr.f32.gmra.mrb[0].mxu0 %v244
    %v331 = vpop.f32.mrb[0].mxu0
    %v332 = vadd.f32 %v264, %v331
    %v333 = vpop.f32.mrb[0].mxu0
    %334 = vdwg.mxu0
    %335 = vst [vmem:[#allocation10] sm:$0xff] %v332
    // Predicated region
    $region38: #{tpu_custom_call.1} parent=1 // pred_check
      _
    $region39: #{tpu_custom_call.1} parent=1 // pred_check_branch
      %337 = sbr.rel (0) target = $region41
    $region40: #{tpu_custom_call.1} parent=1 // pred_region
      %s339 = ssub.s32 128, 128
      %340 = vsyncadd [#allocation4], %s339
      %s342 = sshll.u32 [#allocation10], 4
      %s343 = int_to_ptr.vmem [resolvable:$true] %s342
      %345 = dma.vmem_to_hbm [thread:$0]  %s343, 128, %s5, [#allocation4]
    $region41: #{tpu_custom_call.1} parent=1 // pred_fallthru
      _
    // Predicated region
    $region42: #{tpu_custom_call.1} parent=1 // pred_check
      _
    $region43: #{tpu_custom_call.1} parent=1 // pred_check_branch
      %347 = sbr.rel (0) target = $region45
    $region44: #{tpu_custom_call.1} parent=1 // pred_region
      %348 = dma.done [#allocation4], 128
    $region45: #{tpu_custom_call.1} parent=1 // pred_fallthru
      _
    %349 = vsyncpa [#allocation3], 1
    %350 = vsyncpa [#allocation6], 1
    %351 = vsyncpa [#allocation9], 1
    %352 = vsyncpa [#allocation4], 1

// kernel: tpu_custom_call.1
$region0: #{tpu_custom_call.1}
  #allocation0 [shape = 'u32[]', space=smem, size = 0x4, offset = 0x4, fixed_abs, tag = 'smem constant byte address 0x4 - core index']
  #allocation1 [shape = 'u32[144,128]{1,0:T(1,128)}', space=vmem, size = 0x12000, scoped, tag = 'internal scratch']
  %s0 = inlined_call_operand.hbm [shape: f32[8,8], index: 0, kind: input, shape index: {}]
  %s1 = inlined_call_operand.hbm [shape: f32[8,128], index: 1, kind: input, shape index: {}]
  %s2 = inlined_call_operand.hbm [shape: f32[128,128], index: 2, kind: input, shape index: {}]
  %s3 = inlined_call_operand.hbm [shape: f32[128,128], index: 3, kind: input, shape index: {}]
  %s4 = inlined_call_operand.vmem [shape: f32[3,128], index: 4, kind: input, shape index: {}]
  %s5 = inlined_call_operand.hbm [shape: f32[8,128], index: 5, kind: output, shape index: {}]
  %s6 = sld [smem:[#allocation0]]
  $region46: #{tpu_custom_call.1} parent=0
    _
  %s8 = ssub.s32 1, %s6
  %s9 = scalar_select 0, %s8, %s6
  $region1: #{tpu_custom_call.1} parent=0
    #allocation2 [shape = 'u8[4096]{0}', space=vmem, size = 0x1000, scoped, tag = 'input window, operand 0, single buffered']
    #allocation3 [shape = 's32[1]{0}', space=sflag, size = 0x4, scoped, tag = 'scoped memory for tpu_custom_call.1']
    #allocation4 [shape = 's32[1]{0}', space=sflag, size = 0x4, scoped, tag = 'scoped memory for tpu_custom_call.1']
    #allocation5 [shape = 'u8[4096]{0}', space=vmem, size = 0x1000, scoped, tag = 'input window, operand 1, single buffered']
    #allocation6 [shape = 's32[1]{0}', space=sflag, size = 0x4, scoped, tag = 'scoped memory for tpu_custom_call.1']
    #allocation7 [shape = 'u8[65536]{0}', space=vmem, size = 0x10000, scoped, tag = 'input window, operand 2, single buffered']
    #allocation8 [shape = 'u8[65536]{0}', space=vmem, size = 0x10000, scoped, tag = 'input window, operand 3, single buffered']
    #allocation9 [shape = 's32[1]{0}', space=sflag, size = 0x4, scoped, tag = 'scoped memory for tpu_custom_call.1']
    #allocation10 [shape = 'u8[4096]{0}', space=vmem, size = 0x1000, scoped, tag = 'output window, operand 0, single buffered']
    %10 = vsyncpa [#allocation3], 0
    %11 = vsyncpa [#allocation6], 0
    %12 = vsyncpa [#allocation9], 0
    %13 = vsyncpa [#allocation4], 0
    // Predicated region
    $region2: #{tpu_custom_call.1} parent=1 // pred_check
      _
    $region3: #{tpu_custom_call.1} parent=1 // pred_check_branch
      %15 = sbr.rel (0) target = $region5
    $region4: #{tpu_custom_call.1} parent=1 // pred_region
      %s17 = ssub.s32 128, 128
      %18 = vsyncadd [#allocation3], %s17
      %s20 = sshll.u32 [#allocation2], 4
      %s21 = int_to_ptr.vmem [resolvable:$true] %s20
      %23 = dma.hbm_to_vmem [thread:$0]  %s0, 128, %s21, [#allocation3]
    $region5: #{tpu_custom_call.1} parent=1 // pred_fallthru
      _
    // Predicated region
    $region6: #{tpu_custom_call.1} parent=1 // pred_check
      _
    $region7: #{tpu_custom_call.1} parent=1 // pred_check_branch
      %25 = sbr.rel (0) target = $region9
    $region8: #{tpu_custom_call.1} parent=1 // pred_region
      %s27 = ssub.s32 128, 128
      %28 = vsyncadd [#allocation6], %s27
      %s30 = sshll.u32 [#allocation5], 4
      %s31 = int_to_ptr.vmem [resolvable:$true] %s30
      %33 = dma.hbm_to_vmem [thread:$0]  %s1, 128, %s31, [#allocation6]
    $region9: #{tpu_custom_call.1} parent=1 // pred_fallthru
      _
    // Predicated region
    $region10: #{tpu_custom_call.1} parent=1 // pred_check
      _
    $region11: #{tpu_custom_call.1} parent=1 // pred_check_branch
      %35 = sbr.rel (0) target = $region13
    $region12: #{tpu_custom_call.1} parent=1 // pred_region
      %s37 = ssub.s32 2048, 2048
      %38 = vsyncadd [#allocation6], %s37
      %s39 = sshll.u32 [#allocation7], 4
      %s40 = int_to_ptr.vmem [resolvable:$true] %s39
      %45 = dma.hbm_to_vmem [thread:$0]  %s2, 2048, %s40, [#allocation6], 128, 128, 8
    $region13: #{tpu_custom_call.1} parent=1 // pred_fallthru
      _
    // Predicated region
    $region14: #{tpu_custom_call.1} parent=1 // pred_check
      _
    $region15: #{tpu_custom_call.1} parent=1 // pred_check_branch
      %47 = sbr.rel (0) target = $region17
    $region16: #{tpu_custom_call.1} parent=1 // pred_region
      %s49 = ssub.s32 2048, 2048
      %50 = vsyncadd [#allocation9], %s49
      %s51 = sshll.u32 [#allocation8], 4
      %s52 = int_to_ptr.vmem [resolvable:$true] %s51
      %57 = dma.hbm_to_vmem [thread:$0]  %s3, 2048, %s52, [#allocation9], 128, 128, 8
    $region17: #{tpu_custom_call.1} parent=1 // pred_fallthru
      _
    // Predicated region
    $region18: #{tpu_custom_call.1} parent=1 // pred_check
      _
    $region19: #{tpu_custom_call.1} parent=1 // pred_check_branch
      %59 = sbr.rel (0) target = $region21
    $region20: #{tpu_custom_call.1} parent=1 // pred_region
      _
    $region21: #{tpu_custom_call.1} parent=1 // pred_fallthru
      _
    // Predicated region
    $region22: #{tpu_custom_call.1} parent=1 // pred_check
      _
    $region23: #{tpu_custom_call.1} parent=1 // pred_check_branch
      %61 = sbr.rel (0) target = $region25
    $region24: #{tpu_custom_call.1} parent=1 // pred_region
      %62 = dma.done [#allocation3], 128
    $region25: #{tpu_custom_call.1} parent=1 // pred_fallthru
      _
    // Predicated region
    $region26: #{tpu_custom_call.1} parent=1 // pred_check
      _
    $region27: #{tpu_custom_call.1} parent=1 // pred_check_branch
      %64 = sbr.rel (0) target = $region29
    $region28: #{tpu_custom_call.1} parent=1 // pred_region
      %65 = dma.done [#allocation6], 128
    $region29: #{tpu_custom_call.1} parent=1 // pred_fallthru
      _
    // Predicated region
    $region30: #{tpu_custom_call.1} parent=1 // pred_check
      _
    $region31: #{tpu_custom_call.1} parent=1 // pred_check_branch
      %67 = sbr.rel (0) target = $region33
    $region32: #{tpu_custom_call.1} parent=1 // pred_region
      %68 = dma.done [#allocation6], 2048
    $region33: #{tpu_custom_call.1} parent=1 // pred_fallthru
      _
    // Predicated region
    $region34: #{tpu_custom_call.1} parent=1 // pred_check
      _
    $region35: #{tpu_custom_call.1} parent=1 // pred_check_branch
      %70 = sbr.rel (0) target = $region37
    $region36: #{tpu_custom_call.1} parent=1 // pred_region
      %71 = dma.done [#allocation9], 2048
    $region37: #{tpu_custom_call.1} parent=1 // pred_fallthru
      _
    %v72 = vld [vmem:[#allocation2] sm:$0xff]
    %v73 = vld [vmem:[#allocation5] sm:$0xff]
    %v74 = vld [vmem:[%s4] sm:$0x7]
    %v75 = vlaneseq
    %v76 = vshrl.u32 %v75, 7
    %v77 = vsub.s32 0, %v76
    %v78 = vrot.slane %v74, %v77
    %vm79 = vcmask 64512
    %v81 = vsel %vm79, %v72, 0
    %83 = vmatprep.subr.mxu0 0.0
    %84 = vmatpush1.msra.mxu0 %v73
    %85 = vmatprep.subr.mxu0 0.0
    %86 = vmatpush1.msra.mxu0 0.0
    %87 = vmatprep.subr.mxu0 0.0
    %88 = vmatpush1.msra.mxu0 0.0
    %89 = vmatprep.subr.mxu0 0.0
    %90 = vmatpush1.msra.mxu0 0.0
    %91 = vmatprep.subr.mxu0 0.0
    %92 = vmatpush1.msra.mxu0 0.0
    %93 = vmatprep.subr.mxu0 0.0
    %94 = vmatpush1.msra.mxu0 0.0
    %95 = vmatprep.subr.mxu0 0.0
    %96 = vmatpush1.msra.mxu0 0.0
    %97 = vmatprep.subr.mxu0 0.0
    %98 = vmatpush1.msra.mxu0 0.0
    %99 = vmatprep.subr.mxu0 0.0
    %100 = vmatpush1.msra.mxu0 0.0
    %101 = vmatprep.subr.mxu0 0.0
    %102 = vmatpush1.msra.mxu0 0.0
    %103 = vmatprep.subr.mxu0 0.0
    %104 = vmatpush1.msra.mxu0 0.0
    %105 = vmatprep.subr.mxu0 0.0
    %106 = vmatpush1.msra.mxu0 0.0
    %107 = vmatprep.subr.mxu0 0.0
    %108 = vmatpush1.msra.mxu0 0.0
    %109 = vmatprep.subr.mxu0 0.0
    %110 = vmatpush1.msra.mxu0 0.0
    %111 = vmatprep.subr.mxu0 0.0
    %112 = vmatpush1.msra.mxu0 0.0
    %113 = vmatprep.subr.mxu0 0.0
    %114 = vmatpush1.msra.mxu0 0.0
    %115 = vmatprep.subr.mxu0 0.0
    %116 = vmatpush1.msra.mxu0 0.0
    %117 = vmatprep.subr.mxu0 0.0
    %118 = vmatpush1.msra.mxu0 0.0
    %119 = vmatprep.subr.mxu0 0.0
    %120 = vmatpush1.msra.mxu0 0.0
    %121 = vmatprep.subr.mxu0 0.0
    %122 = vmatpush1.msra.mxu0 0.0
    %123 = vmatprep.subr.mxu0 0.0
    %124 = vmatpush1.msra.mxu0 0.0
    %125 = vmatprep.subr.mxu0 0.0
    %126 = vmatpush1.msra.mxu0 0.0
    %127 = vmatprep.subr.mxu0 0.0
    %128 = vmatpush1.msra.mxu0 0.0
    %129 = vmatprep.subr.mxu0 0.0
    %130 = vmatpush1.msra.mxu0 0.0
    %131 = vmatprep.subr.mxu0 0.0
    %132 = vmatpush1.msra.mxu0 0.0
    %133 = vmatprep.subr.mxu0 0.0
    %134 = vmatpush1.msra.mxu0 0.0
    %135 = vmatprep.subr.mxu0 0.0
    %136 = vmatpush1.msra.mxu0 0.0
    %137 = vmatprep.subr.mxu0 0.0
    %138 = vmatpush1.msra.mxu0 0.0
    %139 = vmatprep.subr.mxu0 0.0
    %140 = vmatpush1.msra.mxu0 0.0
    %141 = vmatprep.subr.mxu0 0.0
    %142 = vmatpush1.msra.mxu0 0.0
    %143 = vmatprep.subr.mxu0 0.0
    %144 = vmatpush1.msra.mxu0 0.0
    %145 = vmatprep.subr.mxu0 0.0
    %146 = vmatpush1.msra.mxu0 0.0
    %147 = vmatprep.mubr.f32.mxu0 0.0
    %148 = vmatmul.mubr.f32.gmra.mrb[0].mxu0 %v81
    %v149 = vpop.f32.mrb[0].mxu0
    %v150 = vadd.f32 %v78, %v149
    %v151 = vpop.f32.mrb[0].mxu0
    %152 = vdwg.mxu0
    %v153 = vmax.f32 %v150, 0.0
    %v154 = vld [vmem:[#allocation7] sm:$0xff]
    %v155 = vld [vmem:[#allocation7 + $0x8] sm:$0xff]
    %v156 = vld [vmem:[#allocation7 + $0x10] sm:$0xff]
    %v157 = vld [vmem:[#allocation7 + $0x18] sm:$0xff]
    %v158 = vld [vmem:[#allocation7 + $0x20] sm:$0xff]
    %v159 = vld [vmem:[#allocation7 + $0x28] sm:$0xff]
    %v160 = vld [vmem:[#allocation7 + $0x30] sm:$0xff]
    %v161 = vld [vmem:[#allocation7 + $0x38] sm:$0xff]
    %v162 = vld [vmem:[#allocation7 + $0x40] sm:$0xff]
    %v163 = vld [vmem:[#allocation7 + $0x48] sm:$0xff]
    %v164 = vld [vmem:[#allocation7 + $0x50] sm:$0xff]
    %v165 = vld [vmem:[#allocation7 + $0x58] sm:$0xff]
    %v166 = vld [vmem:[#allocation7 + $0x60] sm:$0xff]
    %v167 = vld [vmem:[#allocation7 + $0x68] sm:$0xff]
    %v168 = vld [vmem:[#allocation7 + $0x70] sm:$0xff]
    %v169 = vld [vmem:[#allocation7 + $0x78] sm:$0xff]
    %v170 = vlaneseq
    %v171 = vshrl.u32 %v170, 7
    %v172 = vsub.s32 1, %v171
    %v173 = vrot.slane %v74, %v172
    %174 = vmatprep.subr.mxu0 0.0
    %175 = vmatpush1.msra.mxu0 %v154
    %176 = vmatprep.subr.mxu0 0.0
    %177 = vmatpush1.msra.mxu0 %v155
    %178 = vmatprep.subr.mxu0 0.0
    %179 = vmatpush1.msra.mxu0 %v156
    %180 = vmatprep.subr.mxu0 0.0
    %181 = vmatpush1.msra.mxu0 %v157
    %182 = vmatprep.subr.mxu0 0.0
    %183 = vmatpush1.msra.mxu0 %v158
    %184 = vmatprep.subr.mxu0 0.0
    %185 = vmatpush1.msra.mxu0 %v159
    %186 = vmatprep.subr.mxu0 0.0
    %187 = vmatpush1.msra.mxu0 %v160
    %188 = vmatprep.subr.mxu0 0.0
    %189 = vmatpush1.msra.mxu0 %v161
    %190 = vmatprep.subr.mxu0 0.0
    %191 = vmatpush1.msra.mxu0 %v162
    %192 = vmatprep.subr.mxu0 0.0
    %193 = vmatpush1.msra.mxu0 %v163
    %194 = vmatprep.subr.mxu0 0.0
    %195 = vmatpush1.msra.mxu0 %v164
    %196 = vmatprep.subr.mxu0 0.0
    %197 = vmatpush1.msra.mxu0 %v165
    %198 = vmatprep.subr.mxu0 0.0
    %199 = vmatpush1.msra.mxu0 %v166
    %200 = vmatprep.subr.mxu0 0.0
    %201 = vmatpush1.msra.mxu0 %v167
    %202 = vmatprep.subr.mxu0 0.0
    %203 = vmatpush1.msra.mxu0 %v168
    %204 = vmatprep.subr.mxu0 0.0
    %205 = vmatpush1.msra.mxu0 %v169
    %206 = vmatprep.subr.mxu0 0.0
    %207 = vmatpush1.msra.mxu0 0.0
    %208 = vmatprep.subr.mxu0 0.0
    %209 = vmatpush1.msra.mxu0 0.0
    %210 = vmatprep.subr.mxu0 0.0
    %211 = vmatpush1.msra.mxu0 0.0
    %212 = vmatprep.subr.mxu0 0.0
    %213 = vmatpush1.msra.mxu0 0.0
    %214 = vmatprep.subr.mxu0 0.0
    %215 = vmatpush1.msra.mxu0 0.0
    %216 = vmatprep.subr.mxu0 0.0
    %217 = vmatpush1.msra.mxu0 0.0
    %218 = vmatprep.subr.mxu0 0.0
    %219 = vmatpush1.msra.mxu0 0.0
    %220 = vmatprep.subr.mxu0 0.0
    %221 = vmatpush1.msra.mxu0 0.0
    %222 = vmatprep.subr.mxu0 0.0
    %223 = vmatpush1.msra.mxu0 0.0
    %224 = vmatprep.subr.mxu0 0.0
    %225 = vmatpush1.msra.mxu0 0.0
    %226 = vmatprep.subr.mxu0 0.0
    %227 = vmatpush1.msra.mxu0 0.0
    %228 = vmatprep.subr.mxu0 0.0
    %229 = vmatpush1.msra.mxu0 0.0
    %230 = vmatprep.subr.mxu0 0.0
    %231 = vmatpush1.msra.mxu0 0.0
    %232 = vmatprep.subr.mxu0 0.0
    %233 = vmatpush1.msra.mxu0 0.0
    %234 = vmatprep.subr.mxu0 0.0
    %235 = vmatpush1.msra.mxu0 0.0
    %236 = vmatprep.subr.mxu0 0.0
    %237 = vmatpush1.msra.mxu0 0.0
    %238 = vmatprep.mubr.f32.mxu0 0.0
    %239 = vmatmul.mubr.f32.gmra.mrb[0].mxu0 %v153
    %v240 = vpop.f32.mrb[0].mxu0
    %v241 = vadd.f32 %v173, %v240
    %v242 = vpop.f32.mrb[0].mxu0
    %243 = vdwg.mxu0
    %v244 = vmax.f32 %v241, 0.0
    %v245 = vld [vmem:[#allocation8] sm:$0xff]
    %v246 = vld [vmem:[#allocation8 + $0x8] sm:$0xff]
    %v247 = vld [vmem:[#allocation8 + $0x10] sm:$0xff]
    %v248 = vld [vmem:[#allocation8 + $0x18] sm:$0xff]
    %v249 = vld [vmem:[#allocation8 + $0x20] sm:$0xff]
    %v250 = vld [vmem:[#allocation8 + $0x28] sm:$0xff]
    %v251 = vld [vmem:[#allocation8 + $0x30] sm:$0xff]
    %v252 = vld [vmem:[#allocation8 + $0x38] sm:$0xff]
    %v253 = vld [vmem:[#allocation8 + $0x40] sm:$0xff]
    %v254 = vld [vmem:[#allocation8 + $0x48] sm:$0xff]
    %v255 = vld [vmem:[#allocation8 + $0x50] sm:$0xff]
    %v256 = vld [vmem:[#allocation8 + $0x58] sm:$0xff]
    %v257 = vld [vmem:[#allocation8 + $0x60] sm:$0xff]
    %v258 = vld [vmem:[#allocation8 + $0x68] sm:$0xff]
    %v259 = vld [vmem:[#allocation8 + $0x70] sm:$0xff]
    %v260 = vld [vmem:[#allocation8 + $0x78] sm:$0xff]
    %v261 = vlaneseq
    %v262 = vshrl.u32 %v261, 7
    %v263 = vsub.s32 2, %v262
    %v264 = vrot.slane %v74, %v263
    %265 = vmatprep.subr.mxu0 0.0
    %266 = vmatpush1.msra.mxu0 %v245
    %267 = vmatprep.subr.mxu0 0.0
    %268 = vmatpush1.msra.mxu0 %v246
    %269 = vmatprep.subr.mxu0 0.0
    %270 = vmatpush1.msra.mxu0 %v247
    %271 = vmatprep.subr.mxu0 0.0
    %272 = vmatpush1.msra.mxu0 %v248
    %273 = vmatprep.subr.mxu0 0.0
    %274 = vmatpush1.msra.mxu0 %v249
    %275 = vmatprep.subr.mxu0 0.0
    %276 = vmatpush1.msra.mxu0 %v250
    %277 = vmatprep.subr.mxu0 0.0
    %278 = vmatpush1.msra.mxu0 %v251
    %279 = vmatprep.subr.mxu0 0.0
    %280 = vmatpush1.msra.mxu0 %v252
    %281 = vmatprep.subr.mxu0 0.0
    %282 = vmatpush1.msra.mxu0 %v253
    %283 = vmatprep.subr.mxu0 0.0
    %284 = vmatpush1.msra.mxu0 %v254
    %285 = vmatprep.subr.mxu0 0.0
    %286 = vmatpush1.msra.mxu0 %v255
    %287 = vmatprep.subr.mxu0 0.0
    %288 = vmatpush1.msra.mxu0 %v256
    %289 = vmatprep.subr.mxu0 0.0
    %290 = vmatpush1.msra.mxu0 %v257
    %291 = vmatprep.subr.mxu0 0.0
    %292 = vmatpush1.msra.mxu0 %v258
    %293 = vmatprep.subr.mxu0 0.0
    %294 = vmatpush1.msra.mxu0 %v259
    %295 = vmatprep.subr.mxu0 0.0
    %296 = vmatpush1.msra.mxu0 %v260
    %297 = vmatprep.subr.mxu0 0.0
    %298 = vmatpush1.msra.mxu0 0.0
    %299 = vmatprep.subr.mxu0 0.0
    %300 = vmatpush1.msra.mxu0 0.0
    %301 = vmatprep.subr.mxu0 0.0
    %302 = vmatpush1.msra.mxu0 0.0
    %303 = vmatprep.subr.mxu0 0.0
    %304 = vmatpush1.msra.mxu0 0.0
    %305 = vmatprep.subr.mxu0 0.0
    %306 = vmatpush1.msra.mxu0 0.0
    %307 = vmatprep.subr.mxu0 0.0
    %308 = vmatpush1.msra.mxu0 0.0
    %309 = vmatprep.subr.mxu0 0.0
    %310 = vmatpush1.msra.mxu0 0.0
    %311 = vmatprep.subr.mxu0 0.0
    %312 = vmatpush1.msra.mxu0 0.0
    %313 = vmatprep.subr.mxu0 0.0
    %314 = vmatpush1.msra.mxu0 0.0
    %315 = vmatprep.subr.mxu0 0.0
    %316 = vmatpush1.msra.mxu0 0.0
    %317 = vmatprep.subr.mxu0 0.0
    %318 = vmatpush1.msra.mxu0 0.0
    %319 = vmatprep.subr.mxu0 0.0
    %320 = vmatpush1.msra.mxu0 0.0
    %321 = vmatprep.subr.mxu0 0.0
    %322 = vmatpush1.msra.mxu0 0.0
    %323 = vmatprep.subr.mxu0 0.0
    %324 = vmatpush1.msra.mxu0 0.0
    %325 = vmatprep.subr.mxu0 0.0
    %326 = vmatpush1.msra.mxu0 0.0
    %327 = vmatprep.subr.mxu0 0.0
    %328 = vmatpush1.msra.mxu0 0.0
    %329 = vmatprep.mubr.f32.mxu0 0.0
    %330 = vmatmul.mubr.f32.gmra.mrb[0].mxu0 %v244
    %v331 = vpop.f32.mrb[0].mxu0
    %v332 = vadd.f32 %v264, %v331
    %v333 = vpop.f32.mrb[0].mxu0
    %334 = vdwg.mxu0
    %335 = vst [vmem:[#allocation10] sm:$0xff] %v332
    // Predicated region
    $region38: #{tpu_custom_call.1} parent=1 // pred_check
      _
    $region39: #{tpu_custom_call.1} parent=1 // pred_check_branch
      %337 = sbr.rel (0) target = $region41
    $region40: #{tpu_custom_call.1} parent=1 // pred_region
      %s339 = ssub.s32 128, 128
      %340 = vsyncadd [#allocation4], %s339
      %s342 = sshll.u32 [#allocation10], 4
      %s343 = int_to_ptr.vmem [resolvable:$true] %s342
      %345 = dma.vmem_to_hbm [thread:$0]  %s343, 128, %s5, [#allocation4]
    $region41: #{tpu_custom_call.1} parent=1 // pred_fallthru
      _
    // Predicated region
    $region42: #{tpu_custom_call.1} parent=1 // pred_check
      _
    $region43: #{tpu_custom_call.1} parent=1 // pred_check_branch
      %347 = sbr.rel (0) target = $region45
    $region44: #{tpu_custom_call.1} parent=1 // pred_region
      %348 = dma.done [#allocation4], 128
    $region45: #{tpu_custom_call.1} parent=1 // pred_fallthru
      _
    %349 = vsyncpa [#allocation3], 1
    %350 = vsyncpa [#allocation6], 1
    %351 = vsyncpa [#allocation9], 1
    %352 = vsyncpa [#allocation4], 1

</llo_original>
